<compile_context>
chip_gen: v5e
topology: v5e:2x2
jax: 0.10.0
libtpu: 0.0.40
codegen_flags: <defaults>
</compile_context>

<pallas_src>
import functools

import jax
import jax.numpy as jnp
from jax.experimental import pallas as pl
from jax.experimental.pallas import tpu as pltpu

LANE = 128   # lane width
SUB = 8      # sublane width


def _round_up(n, m):
    return (n + m - 1) // m * m


# ---------------------------------------------------------------------------
# Kernel: whole MLP on one batch tile. p_ref is the packed parameter buffer:
#   rows [0, d_in_p)                     -> w1  (d_in_p, width)
#   rows [d_in_p, d_in_p+width)          -> w2  (width,  width)
#   rows [d_in_p+width, d_in_p+2*width)  -> w3  (width,  width)
#   rows [d_in_p+2*width + 0*SUB][0]     -> b1  (1, width)
#   rows [d_in_p+2*width + 1*SUB][0]     -> b2  (1, width)
#   rows [d_in_p+2*width + 2*SUB][0]     -> b3  (1, width)
# All static slices -> zero-cost ref views.
# ---------------------------------------------------------------------------
def _generator_kernel(x_ref, p_ref, out_ref, *, d_in_p, width):
    r_w2 = d_in_p
    r_w3 = d_in_p + width
    r_b1 = d_in_p + 2 * width
    r_b2 = r_b1 + SUB
    r_b3 = r_b2 + SUB

    x = x_ref[...]                               # (M, d_in_p) f32
    w1 = p_ref[0:d_in_p, :]                      # (d_in_p, width)
    w2 = p_ref[r_w2:r_w2 + width, :]             # (width, width)
    w3 = p_ref[r_w3:r_w3 + width, :]             # (width, width)
    b1 = p_ref[r_b1:r_b1 + 1, :]                 # (1, width)
    b2 = p_ref[r_b2:r_b2 + 1, :]
    b3 = p_ref[r_b3:r_b3 + 1, :]

    # input_layer + relu6
    h = jnp.dot(x, w1, preferred_element_type=jnp.float32) + b1
    h = jnp.clip(h, 0.0, 6.0)
    # hidden_layer + relu6
    h = jnp.dot(h, w2, preferred_element_type=jnp.float32) + b2
    h = jnp.clip(h, 0.0, 6.0)
    # output_layer (no activation)
    y = jnp.dot(h, w3, preferred_element_type=jnp.float32) + b3

    out_ref[...] = y.astype(out_ref.dtype)


# ---------------------------------------------------------------------------
# Parameter packing: pad every feature dim to a lane multiple and stack all
# six tensors into one f32 buffer (one DMA instead of six).
# ---------------------------------------------------------------------------
def pack_params(params):
    w1, b1 = params["w1"], params["b1"]
    w2, b2 = params["w2"], params["b2"]
    w3, b3 = params["w3"], params["b3"]

    input_dim, h_size = w1.shape
    output_dim = w3.shape[1]

    d_in_p = _round_up(input_dim, LANE)
    width = _round_up(max(h_size, output_dim), LANE)

    def pad2(a, rows, cols):
        return jnp.pad(a, ((0, rows - a.shape[0]), (0, cols - a.shape[1])))

    w1_p = pad2(w1, d_in_p, width)
    w2_p = pad2(w2, width, width)
    w3_p = pad2(w3, width, width)
    b1_p = pad2(b1.reshape(1, -1), SUB, width)
    b2_p = pad2(b2.reshape(1, -1), SUB, width)
    b3_p = pad2(b3.reshape(1, -1), SUB, width)

    packed = jnp.concatenate([w1_p, w2_p, w3_p, b1_p, b2_p, b3_p],
                             axis=0).astype(jnp.float32)
    meta = {"d_in_p": d_in_p, "width": width,
            "input_dim": input_dim, "output_dim": output_dim}
    return packed, meta


# ---------------------------------------------------------------------------
# Forward wrapper.
# ---------------------------------------------------------------------------
def generator_forward(x, packed, meta, *, tile_m=512):
    d_in_p = meta["d_in_p"]
    width = meta["width"]
    input_dim = meta["input_dim"]
    output_dim = meta["output_dim"]

    B = x.shape[0]
    kernel = functools.partial(_generator_kernel, d_in_p=d_in_p, width=width)

    if B <= tile_m:
        b_pad = _round_up(max(B, SUB), SUB)
    else:
        b_pad = _round_up(B, tile_m)

    # Zero-pad batch rows and feature columns (padding contributes exact zeros).
    x_p = jnp.pad(x.astype(jnp.float32),
                  ((0, b_pad - B), (0, d_in_p - input_dim)))

    if b_pad <= tile_m:
        # Gridless path: everything fits in VMEM; no pipeline machinery.
        vmem = pl.BlockSpec(memory_space=pltpu.MemorySpace.VMEM)
        out_p = pl.pallas_call(
            kernel,
            out_shape=jax.ShapeDtypeStruct((b_pad, width), jnp.float32),
            in_specs=[vmem, vmem],
            out_specs=vmem,
        )(x_p, packed)
    else:
        # Batch-tiled path: grid over M, weights resident across all steps,
        # batch axis parallel (v7x megacore splits it across TensorCores).
        n_rows = packed.shape[0]
        out_p = pl.pallas_call(
            kernel,
            out_shape=jax.ShapeDtypeStruct((b_pad, width), jnp.float32),
            grid=(b_pad // tile_m,),
            in_specs=[
                pl.BlockSpec((tile_m, d_in_p), lambda i: (i, 0)),
                pl.BlockSpec((n_rows, width), lambda i: (0, 0)),
            ],
            out_specs=pl.BlockSpec((tile_m, width), lambda i: (i, 0)),
            compiler_params=pltpu.CompilerParams(
                dimension_semantics=("parallel",)),
        )(x_p, packed)

    return out_p[:B, :output_dim]


# ---------------------------------------------------------------------------
# Init (mimics PyTorch nn.Linear default U[-1/sqrt(fan_in), 1/sqrt(fan_in)])
# and a pure-JAX reference for correctness.
# ---------------------------------------------------------------------------
def init_params(key, input_dim, output_dim, h_size):
    ks = jax.random.split(key, 6)

    def linear(kw, kb, fan_in, fan_out):
        bound = 1.0 / jnp.sqrt(fan_in)
        w = jax.random.uniform(kw, (fan_in, fan_out), jnp.float32,
                               minval=-bound, maxval=bound)
        b = jax.random.uniform(kb, (1, fan_out), jnp.float32,
                               minval=-bound, maxval=bound)
        return w, b

    w1, b1 = linear(ks[0], ks[1], input_dim, h_size)
    w2, b2 = linear(ks[2], ks[3], h_size, h_size)
    w3, b3 = linear(ks[4], ks[5], h_size, output_dim)
    return {"w1": w1, "b1": b1, "w2": w2, "b2": b2, "w3": w3, "b3": b3}


def generator_reference(x, params):
    h = jnp.clip(x @ params["w1"] + params["b1"], 0.0, 6.0)
    h = jnp.clip(h @ params["w2"] + params["b2"], 0.0, 6.0)
    return h @ params["w3"] + params["b3"]


if __name__ == "__main__":
    input_dim, output_dim, h_size = 32, 16, 64
    batch = 8

    key = jax.random.PRNGKey(0)
    kx, kp, kx2 = jax.random.split(key, 3)
    x = jax.random.normal(kx, (batch, input_dim), jnp.float32)
    params = init_params(kp, input_dim, output_dim, h_size)
    packed, meta = pack_params(params)

    # Small batch -> gridless VMEM-resident path.
    out = jax.block_until_ready(generator_forward(x, packed, meta))
    ref = generator_reference(x, params)
    assert out.shape == (batch, output_dim)
    assert jnp.allclose(out, ref, atol=1e-4, rtol=1e-4), "small-batch mismatch"

    # Larger batch -> batch-tiled grid path with resident weights.
    big_batch = 600
    x_big = jax.random.normal(kx2, (big_batch, input_dim), jnp.float32)
    out_big = jax.block_until_ready(
        generator_forward(x_big, packed, meta, tile_m=256))
    ref_big = generator_reference(x_big, params)
    assert out_big.shape == (big_batch, output_dim)
    assert jnp.allclose(out_big, ref_big, atol=1e-4, rtol=1e-4), \
        "big-batch mismatch"

    print("KERNEL_OK")
</pallas_src>

<mosaic_0001>
module attributes {stable_mosaic.version = 11 : i64} {
  func.func @_generator_kernel(%arg0: memref<8x128xf32, #tpu.memory_space<vmem>>, %arg1: memref<408x128xf32, #tpu.memory_space<vmem>>, %arg2: memref<8x128xf32, #tpu.memory_space<vmem>>) attributes {dimension_semantics = [], scalar_prefetch = 0 : i64, scratch_operands = 0 : i64, tpu.core_type = #tpu.core_type<tc>} {
    %c0 = arith.constant 0 : index
    %c0_0 = arith.constant 0 : index
    %0 = vector.load %arg0[%c0, %c0_0] : memref<8x128xf32, #tpu.memory_space<vmem>>, vector<8x128xf32>
    %c0_1 = arith.constant 0 : index
    %c0_2 = arith.constant 0 : index
    %1 = vector.load %arg1[%c0_1, %c0_2] : memref<408x128xf32, #tpu.memory_space<vmem>>, vector<128x128xf32>
    %c128 = arith.constant 128 : index
    %c0_3 = arith.constant 0 : index
    %2 = vector.load %arg1[%c128, %c0_3] : memref<408x128xf32, #tpu.memory_space<vmem>>, vector<128x128xf32>
    %c256 = arith.constant 256 : index
    %c0_4 = arith.constant 0 : index
    %3 = vector.load %arg1[%c256, %c0_4] : memref<408x128xf32, #tpu.memory_space<vmem>>, vector<128x128xf32>
    %c384 = arith.constant 384 : index
    %c0_5 = arith.constant 0 : index
    %4 = vector.load %arg1[%c384, %c0_5] : memref<408x128xf32, #tpu.memory_space<vmem>>, vector<1x128xf32>
    %c392 = arith.constant 392 : index
    %c0_6 = arith.constant 0 : index
    %5 = vector.load %arg1[%c392, %c0_6] : memref<408x128xf32, #tpu.memory_space<vmem>>, vector<1x128xf32>
    %c400 = arith.constant 400 : index
    %c0_7 = arith.constant 0 : index
    %6 = vector.load %arg1[%c400, %c0_7] : memref<408x128xf32, #tpu.memory_space<vmem>>, vector<1x128xf32>
    %cst = arith.constant dense<0.000000e+00> : vector<8x128xf32>
    %7 = tpu.matmul %0, %1, %cst {dimension_numbers = #tpu.dot_dimension_numbers<[1], [0], [0], [1], [0, 0, 1, 1], [], []>} : vector<8x128xf32>, vector<128x128xf32>, vector<8x128xf32> -> vector<8x128xf32>
    %8 = vector.broadcast %4 : vector<1x128xf32> to vector<8x128xf32>
    %9 = arith.addf %7, %8 : vector<8x128xf32>
    %cst_8 = arith.constant 0.000000e+00 : f32
    %cst_9 = arith.constant 6.000000e+00 : f32
    %10 = vector.broadcast %cst_8 : f32 to vector<8x128xf32>
    %11 = arith.maximumf %10, %9 : vector<8x128xf32>
    %12 = vector.broadcast %cst_9 : f32 to vector<8x128xf32>
    %13 = arith.minimumf %12, %11 : vector<8x128xf32>
    %cst_10 = arith.constant dense<0.000000e+00> : vector<8x128xf32>
    %14 = tpu.matmul %13, %2, %cst_10 {dimension_numbers = #tpu.dot_dimension_numbers<[1], [0], [0], [1], [0, 0, 1, 1], [], []>} : vector<8x128xf32>, vector<128x128xf32>, vector<8x128xf32> -> vector<8x128xf32>
    %15 = vector.broadcast %5 : vector<1x128xf32> to vector<8x128xf32>
    %16 = arith.addf %14, %15 : vector<8x128xf32>
    %cst_11 = arith.constant 0.000000e+00 : f32
    %cst_12 = arith.constant 6.000000e+00 : f32
    %17 = vector.broadcast %cst_11 : f32 to vector<8x128xf32>
    %18 = arith.maximumf %17, %16 : vector<8x128xf32>
    %19 = vector.broadcast %cst_12 : f32 to vector<8x128xf32>
    %20 = arith.minimumf %19, %18 : vector<8x128xf32>
    %cst_13 = arith.constant dense<0.000000e+00> : vector<8x128xf32>
    %21 = tpu.matmul %20, %3, %cst_13 {dimension_numbers = #tpu.dot_dimension_numbers<[1], [0], [0], [1], [0, 0, 1, 1], [], []>} : vector<8x128xf32>, vector<128x128xf32>, vector<8x128xf32> -> vector<8x128xf32>
    %22 = vector.broadcast %6 : vector<1x128xf32> to vector<8x128xf32>
    %23 = arith.addf %21, %22 : vector<8x128xf32>
    %c0_14 = arith.constant 0 : index
    %c0_15 = arith.constant 0 : index
    %24 = vector.load %arg2[%c0_14, %c0_15] : memref<8x128xf32, #tpu.memory_space<vmem>>, vector<8x128xf32>
    tpu.vector_store %arg2[%c0_14, %c0_15], %23 {strides = array<i32>} : memref<8x128xf32, #tpu.memory_space<vmem>>, vector<8x128xf32>,
    return
  }
}

</mosaic_0001>

<llo_original>
// kernel: tpu_custom_call.1
$region0: #{tpu_custom_call.1}
  #allocation0 [shape = 'u32[]', space=smem, size = 0x4, offset = 0x4, fixed_abs, tag = 'smem constant byte address 0x4 - core index']
  #allocation1 [shape = 'u32[72,128]{1,0:T(1,128)}', space=vmem, size = 0x9000, scoped, tag = 'internal scratch']
  %s0 = inlined_call_operand.hbm [shape: f32[8,128], index: 0, kind: input, shape index: {}]
  %s1 = inlined_call_operand.hbm [shape: f32[408,128], index: 1, kind: input, shape index: {}]
  %s2 = inlined_call_operand.hbm [shape: f32[8,128], index: 2, kind: output, shape index: {}]
  %s3 = sld [smem:[#allocation0]]
  $region26: #{tpu_custom_call.1} parent=0
    _
  %s5 = ssub.s32 1, %s3
  %s6 = scalar_select 0, %s5, %s3
  $region1: #{tpu_custom_call.1} parent=0
    #allocation2 [shape = 'u8[4096]{0}', space=vmem, size = 0x1000, scoped, tag = 'input window, operand 0, single buffered']
    #allocation3 [shape = 's32[1]{0}', space=sflag, size = 0x4, scoped, tag = 'scoped memory for tpu_custom_call.1']
    #allocation4 [shape = 's32[1]{0}', space=sflag, size = 0x4, scoped, tag = 'scoped memory for tpu_custom_call.1']
    #allocation5 [shape = 'u8[208896]{0}', space=vmem, size = 0x33000, scoped, tag = 'input window, operand 1, single buffered']
    #allocation6 [shape = 's32[1]{0}', space=sflag, size = 0x4, scoped, tag = 'scoped memory for tpu_custom_call.1']
    #allocation7 [shape = 'u8[4096]{0}', space=vmem, size = 0x1000, scoped, tag = 'output window, operand 0, single buffered']
    %7 = vsyncpa [#allocation3], 0
    %8 = vsyncpa [#allocation6], 0
    %9 = vsyncpa [#allocation4], 0
    // Predicated region
    $region2: #{tpu_custom_call.1} parent=1 // pred_check
      _
    $region3: #{tpu_custom_call.1} parent=1 // pred_check_branch
      %11 = sbr.rel (0) target = $region5
    $region4: #{tpu_custom_call.1} parent=1 // pred_region
      %13 = vsyncadd [#allocation3], 0
      %s15 = sshll.u32 %s0, 4
      %s16 = int_to_ptr.hbm [resolvable:$true] %s15
      %s17 = sshll.u32 [#allocation2], 4
      %s18 = int_to_ptr.vmem [resolvable:$true] %s17
      %20 = dma.hbm_to_vmem [thread:$0]  %s16, 128, %s18, [#allocation3]
    $region5: #{tpu_custom_call.1} parent=1 // pred_fallthru
      _
    // Predicated region
    $region6: #{tpu_custom_call.1} parent=1 // pred_check
      _
    $region7: #{tpu_custom_call.1} parent=1 // pred_check_branch
      %22 = sbr.rel (0) target = $region9
    $region8: #{tpu_custom_call.1} parent=1 // pred_region
      %24 = vsyncadd [#allocation6], 0
      %s25 = sshll.u32 %s1, 4
      %s26 = int_to_ptr.hbm [resolvable:$true] %s25
      %s27 = sshll.u32 [#allocation5], 4
      %s28 = int_to_ptr.vmem [resolvable:$true] %s27
      %33 = dma.hbm_to_vmem [thread:$0]  %s26, 6528, %s28, [#allocation6], 128, 128, 8
    $region9: #{tpu_custom_call.1} parent=1 // pred_fallthru
      _
    // Predicated region
    $region10: #{tpu_custom_call.1} parent=1 // pred_check
      _
    $region11: #{tpu_custom_call.1} parent=1 // pred_check_branch
      %35 = sbr.rel (0) target = $region13
    $region12: #{tpu_custom_call.1} parent=1 // pred_region
      %37 = dma.done [#allocation3], 128
    $region13: #{tpu_custom_call.1} parent=1 // pred_fallthru
      _
    // Predicated region
    $region14: #{tpu_custom_call.1} parent=1 // pred_check
      _
    $region15: #{tpu_custom_call.1} parent=1 // pred_check_branch
      %39 = sbr.rel (0) target = $region17
    $region16: #{tpu_custom_call.1} parent=1 // pred_region
      %41 = dma.done [#allocation6], 6528
    $region17: #{tpu_custom_call.1} parent=1 // pred_fallthru
      _
    %v42 = vld [vmem:[#allocation2] sm:$0xff]
    %v43 = vld [vmem:[#allocation5] sm:$0xff]
    %v44 = vld [vmem:[#allocation5 + $0x8] sm:$0xff]
    %v45 = vld [vmem:[#allocation5 + $0x10] sm:$0xff]
    %v46 = vld [vmem:[#allocation5 + $0x18] sm:$0xff]
    %v47 = vld [vmem:[#allocation5 + $0x20] sm:$0xff]
    %v48 = vld [vmem:[#allocation5 + $0x28] sm:$0xff]
    %v49 = vld [vmem:[#allocation5 + $0x30] sm:$0xff]
    %v50 = vld [vmem:[#allocation5 + $0x38] sm:$0xff]
    %v51 = vld [vmem:[#allocation5 + $0x40] sm:$0xff]
    %v52 = vld [vmem:[#allocation5 + $0x48] sm:$0xff]
    %v53 = vld [vmem:[#allocation5 + $0x50] sm:$0xff]
    %v54 = vld [vmem:[#allocation5 + $0x58] sm:$0xff]
    %v55 = vld [vmem:[#allocation5 + $0x60] sm:$0xff]
    %v56 = vld [vmem:[#allocation5 + $0x68] sm:$0xff]
    %v57 = vld [vmem:[#allocation5 + $0x70] sm:$0xff]
    %v58 = vld [vmem:[#allocation5 + $0x78] sm:$0xff]
    %v59 = vld [vmem:[#allocation5 + $0x80] sm:$0xff]
    %v60 = vld [vmem:[#allocation5 + $0x88] sm:$0xff]
    %v61 = vld [vmem:[#allocation5 + $0x90] sm:$0xff]
    %v62 = vld [vmem:[#allocation5 + $0x98] sm:$0xff]
    %v63 = vld [vmem:[#allocation5 + $0xa0] sm:$0xff]
    %v64 = vld [vmem:[#allocation5 + $0xa8] sm:$0xff]
    %v65 = vld [vmem:[#allocation5 + $0xb0] sm:$0xff]
    %v66 = vld [vmem:[#allocation5 + $0xb8] sm:$0xff]
    %v67 = vld [vmem:[#allocation5 + $0xc0] sm:$0xff]
    %v68 = vld [vmem:[#allocation5 + $0xc8] sm:$0xff]
    %v69 = vld [vmem:[#allocation5 + $0xd0] sm:$0xff]
    %v70 = vld [vmem:[#allocation5 + $0xd8] sm:$0xff]
    %v71 = vld [vmem:[#allocation5 + $0xe0] sm:$0xff]
    %v72 = vld [vmem:[#allocation5 + $0xe8] sm:$0xff]
    %v73 = vld [vmem:[#allocation5 + $0xf0] sm:$0xff]
    %v74 = vld [vmem:[#allocation5 + $0xf8] sm:$0xff]
    %v75 = vld [vmem:[#allocation5 + $0x100] sm:$0xff]
    %v76 = vld [vmem:[#allocation5 + $0x108] sm:$0xff]
    %v77 = vld [vmem:[#allocation5 + $0x110] sm:$0xff]
    %v78 = vld [vmem:[#allocation5 + $0x118] sm:$0xff]
    %v79 = vld [vmem:[#allocation5 + $0x120] sm:$0xff]
    %v80 = vld [vmem:[#allocation5 + $0x128] sm:$0xff]
    %v81 = vld [vmem:[#allocation5 + $0x130] sm:$0xff]
    %v82 = vld [vmem:[#allocation5 + $0x138] sm:$0xff]
    %v83 = vld [vmem:[#allocation5 + $0x140] sm:$0xff]
    %v84 = vld [vmem:[#allocation5 + $0x148] sm:$0xff]
    %v85 = vld [vmem:[#allocation5 + $0x150] sm:$0xff]
    %v86 = vld [vmem:[#allocation5 + $0x158] sm:$0xff]
    %v87 = vld [vmem:[#allocation5 + $0x160] sm:$0xff]
    %v88 = vld [vmem:[#allocation5 + $0x168] sm:$0xff]
    %v89 = vld [vmem:[#allocation5 + $0x170] sm:$0xff]
    %v90 = vld [vmem:[#allocation5 + $0x178] sm:$0xff]
    %v91 = vld [vmem:[#allocation5 + $0x180] sm:$0x1]
    %v92 = vld [vmem:[#allocation5 + $0x188] sm:$0x1]
    %v93 = vld [vmem:[#allocation5 + $0x190] sm:$0x1]
    %v94 = vperm.slane %v91, 0
    %95 = vmatpush.msra.mxu0 %v58
    %96 = vmatpush.msra.mxu0 %v57
    %97 = vmatpush.msra.mxu0 %v56
    %98 = vmatpush.msra.mxu0 %v55
    %99 = vmatpush.msra.mxu0 %v54
    %100 = vmatpush.msra.mxu0 %v53
    %101 = vmatpush.msra.mxu0 %v52
    %102 = vmatpush.msra.mxu0 %v51
    %103 = vmatpush.msra.mxu0 %v50
    %104 = vmatpush.msra.mxu0 %v49
    %105 = vmatpush.msra.mxu0 %v48
    %106 = vmatpush.msra.mxu0 %v47
    %107 = vmatpush.msra.mxu0 %v46
    %108 = vmatpush.msra.mxu0 %v45
    %109 = vmatpush.msra.mxu0 %v44
    %110 = vmatpush.msra.mxu0 %v43
    %111 = vmatmul.f32.gmra.mxu0 %v42
    %v112 = vpop.f32.mrf.mxu0
    %v113 = vadd.f32 %v94, %v112
    %114 = vdwg.mxu0
    %v115 = vmax.f32 %v113, 0.0
    %v116 = vmin.f32 %v115, 6.0
    %v117 = vperm.slane %v92, 0
    %118 = vmatpush.msra.mxu0 %v74
    %119 = vmatpush.msra.mxu0 %v73
    %120 = vmatpush.msra.mxu0 %v72
    %121 = vmatpush.msra.mxu0 %v71
    %122 = vmatpush.msra.mxu0 %v70
    %123 = vmatpush.msra.mxu0 %v69
    %124 = vmatpush.msra.mxu0 %v68
    %125 = vmatpush.msra.mxu0 %v67
    %126 = vmatpush.msra.mxu0 %v66
    %127 = vmatpush.msra.mxu0 %v65
    %128 = vmatpush.msra.mxu0 %v64
    %129 = vmatpush.msra.mxu0 %v63
    %130 = vmatpush.msra.mxu0 %v62
    %131 = vmatpush.msra.mxu0 %v61
    %132 = vmatpush.msra.mxu0 %v60
    %133 = vmatpush.msra.mxu0 %v59
    %134 = vmatmul.f32.gmra.mxu0 %v116
    %v135 = vpop.f32.mrf.mxu0
    %v136 = vadd.f32 %v117, %v135
    %137 = vdwg.mxu0
    %v138 = vmax.f32 %v136, 0.0
    %v139 = vmin.f32 %v138, 6.0
    %v140 = vperm.slane %v93, 0
    %141 = vmatpush.msra.mxu0 %v90
    %142 = vmatpush.msra.mxu0 %v89
    %143 = vmatpush.msra.mxu0 %v88
    %144 = vmatpush.msra.mxu0 %v87
    %145 = vmatpush.msra.mxu0 %v86
    %146 = vmatpush.msra.mxu0 %v85
    %147 = vmatpush.msra.mxu0 %v84
    %148 = vmatpush.msra.mxu0 %v83
    %149 = vmatpush.msra.mxu0 %v82
    %150 = vmatpush.msra.mxu0 %v81
    %151 = vmatpush.msra.mxu0 %v80
    %152 = vmatpush.msra.mxu0 %v79
    %153 = vmatpush.msra.mxu0 %v78
    %154 = vmatpush.msra.mxu0 %v77
    %155 = vmatpush.msra.mxu0 %v76
    %156 = vmatpush.msra.mxu0 %v75
    %157 = vmatmul.f32.gmra.mxu0 %v139
    %v158 = vpop.f32.mrf.mxu0
    %v159 = vadd.f32 %v140, %v158
    %160 = vdwg.mxu0
    %161 = vst [vmem:[#allocation7] sm:$0xff] %v159
    // Predicated region
    $region18: #{tpu_custom_call.1} parent=1 // pred_check
      _
    $region19: #{tpu_custom_call.1} parent=1 // pred_check_branch
      %163 = sbr.rel (0) target = $region21
    $region20: #{tpu_custom_call.1} parent=1 // pred_region
      %165 = vsyncadd [#allocation4], 0
      %s167 = sshll.u32 [#allocation7], 4
      %s168 = int_to_ptr.vmem [resolvable:$true] %s167
      %s169 = sshll.u32 %s2, 4
      %s170 = int_to_ptr.hbm [resolvable:$true] %s169
      %172 = dma.vmem_to_hbm [thread:$0]  %s168, 128, %s170, [#allocation4]
    $region21: #{tpu_custom_call.1} parent=1 // pred_fallthru
      _
    // Predicated region
    $region22: #{tpu_custom_call.1} parent=1 // pred_check
      _
    $region23: #{tpu_custom_call.1} parent=1 // pred_check_branch
      %174 = sbr.rel (0) target = $region25
    $region24: #{tpu_custom_call.1} parent=1 // pred_region
      %176 = dma.done [#allocation4], 128
    $region25: #{tpu_custom_call.1} parent=1 // pred_fallthru
      _
    %177 = vsyncpa [#allocation3], 1
    %178 = vsyncpa [#allocation6], 1
    %179 = vsyncpa [#allocation4], 1

</llo_original>
